<compile_context>
chip_gen: v7x
topology: tpu7x:2x2x1
jax: 0.10.0
libtpu: 0.0.40
codegen_flags: <defaults>
</compile_context>

<pallas_src>
import jax
import jax.numpy as jnp
from jax.experimental import pallas as pl
from jax.experimental.pallas import tpu as pltpu


HIDDEN1, HIDDEN2, HIDDEN3 = 32, 32, 16
MAX_TILE_B = 1024


def _round_up(x, m):
    return ((x + m - 1) // m) * m


def dqn_kernel(x_ref,
               w1_ref, b1_ref,
               w2_ref, b2_ref,
               w3_ref, b3_ref,
               w4_ref, b4_ref,
               o_ref):
    x = x_ref[...]                                   # (tile_b, state_dim) f32

    h = jnp.maximum(
        jnp.dot(x, w1_ref[...], preferred_element_type=jnp.float32) + b1_ref[...], 0.0)
    h = jnp.maximum(
        jnp.dot(h, w2_ref[...], preferred_element_type=jnp.float32) + b2_ref[...], 0.0)
    h = jnp.maximum(
        jnp.dot(h, w3_ref[...], preferred_element_type=jnp.float32) + b3_ref[...], 0.0)
    out = jnp.dot(h, w4_ref[...], preferred_element_type=jnp.float32) + b4_ref[...]

    o_ref[...] = out.astype(o_ref.dtype)             # (tile_b, action_dim)


def dqn_forward(x, params, tile_b=None):
    """x: (B, state_dim) f32 -> (B, action_dim) f32."""
    B, state_dim = x.shape
    action_dim = params["w4"].shape[1]

    if tile_b is None:
        # Two grid steps for typical batches (both TCs busy on v7x); cap so
        # very large batches still use big, overhead-amortizing tiles.
        tile_b = max(8, min(MAX_TILE_B, _round_up(pl.cdiv(B, 2), 8)))
    grid = (pl.cdiv(B, tile_b),)

    const = lambda i: (0, 0)   # weights/biases: same block every step (VMEM-resident)

    flops = 2 * B * (state_dim * HIDDEN1 + HIDDEN1 * HIDDEN2
                     + HIDDEN2 * HIDDEN3 + HIDDEN3 * action_dim)
    param_bytes = sum(int(p.size) * p.dtype.itemsize for p in params.values())
    bytes_accessed = int(x.size) * 4 + B * action_dim * 4 + param_bytes

    out = pl.pallas_call(
        dqn_kernel,
        out_shape=jax.ShapeDtypeStruct((B, action_dim), jnp.float32),
        grid=grid,
        in_specs=[
            pl.BlockSpec((tile_b, state_dim), lambda i: (i, 0)),   # x tile
            pl.BlockSpec((state_dim, HIDDEN1), const),             # w1 (resident)
            pl.BlockSpec((1, HIDDEN1), const),                     # b1
            pl.BlockSpec((HIDDEN1, HIDDEN2), const),               # w2
            pl.BlockSpec((1, HIDDEN2), const),                     # b2
            pl.BlockSpec((HIDDEN2, HIDDEN3), const),               # w3
            pl.BlockSpec((1, HIDDEN3), const),                     # b3
            pl.BlockSpec((HIDDEN3, action_dim), const),            # w4
            pl.BlockSpec((1, action_dim), const),                  # b4
        ],
        out_specs=pl.BlockSpec((tile_b, action_dim), lambda i: (i, 0)),
        compiler_params=pltpu.CompilerParams(
            dimension_semantics=("parallel",),   # shard batch tiles across TCs (v7x)
        ),
        cost_estimate=pl.CostEstimate(
            flops=flops, transcendentals=0, bytes_accessed=bytes_accessed),
    )(x,
      params["w1"], params["b1"],
      params["w2"], params["b2"],
      params["w3"], params["b3"],
      params["w4"], params["b4"])

    return out


def init_params(state_dim, action_dim, key):
    """Deterministic init mimicking PyTorch Linear default U[-1/sqrt(fan_in), +].

    Weights stored as (in, out) f32; biases as (1, out) f32."""
    dims = [(state_dim, HIDDEN1), (HIDDEN1, HIDDEN2),
            (HIDDEN2, HIDDEN3), (HIDDEN3, action_dim)]
    params = {}
    keys = jax.random.split(key, 2 * len(dims))
    for i, (fan_in, fan_out) in enumerate(dims):
        bound = float(fan_in) ** -0.5
        w = jax.random.uniform(keys[2 * i], (fan_in, fan_out), jnp.float32,
                               minval=-bound, maxval=bound)
        b = jax.random.uniform(keys[2 * i + 1], (1, fan_out), jnp.float32,
                               minval=-bound, maxval=bound)
        params[f"w{i + 1}"] = w
        params[f"b{i + 1}"] = b
    return params


def dqn_reference(x, params):
    """Pure-JAX reference (same f32 weights)."""
    h = jnp.maximum(x @ params["w1"] + params["b1"], 0.0)
    h = jnp.maximum(h @ params["w2"] + params["b2"], 0.0)
    h = jnp.maximum(h @ params["w3"] + params["b3"], 0.0)
    return h @ params["w4"] + params["b4"]


if __name__ == "__main__":
    # Small, but exercises: 2 grid steps (one per TC on v7x) and a partial
    # (masked) last batch block since 300 is not a multiple of the 152-row tile.
    batch = 300
    state_dim = 8
    action_dim = 4

    key = jax.random.PRNGKey(0)
    k_x, k_p = jax.random.split(key)

    x = jax.random.normal(k_x, (batch, state_dim), dtype=jnp.float32)
    params = init_params(state_dim, action_dim, k_p)

    out = dqn_forward(x, params)
    out = jax.block_until_ready(out)

    ref = dqn_reference(x, params)
    assert out.shape == (batch, action_dim), out.shape
    assert jnp.allclose(out, ref, atol=2e-4, rtol=2e-4), "mismatch vs reference"

    print("KERNEL_OK")
</pallas_src>

<mosaic_0001>
module attributes {stable_mosaic.version = 11 : i64} {
  func.func @dqn_kernel(%arg0: i32, %arg1: memref<152x8xf32, #tpu.memory_space<vmem>>, %arg2: memref<8x32xf32, #tpu.memory_space<vmem>>, %arg3: memref<1x32xf32, #tpu.memory_space<vmem>>, %arg4: memref<32x32xf32, #tpu.memory_space<vmem>>, %arg5: memref<1x32xf32, #tpu.memory_space<vmem>>, %arg6: memref<32x16xf32, #tpu.memory_space<vmem>>, %arg7: memref<1x16xf32, #tpu.memory_space<vmem>>, %arg8: memref<16x4xf32, #tpu.memory_space<vmem>>, %arg9: memref<1x4xf32, #tpu.memory_space<vmem>>, %arg10: memref<152x4xf32, #tpu.memory_space<vmem>>) attributes {dimension_semantics = [#tpu.dimension_semantics<parallel>], iteration_bounds = array<i64: 2>, scalar_prefetch = 0 : i64, scratch_operands = 0 : i64, tpu.core_type = #tpu.core_type<tc>, window_params = [{transform_indices = @transform_0, window_bounds = array<i64: 152, 8>}, {pipeline_mode = #tpu.pipeline_mode<synchronous>, transform_indices = @transform_1, window_bounds = array<i64: 8, 32>}, {pipeline_mode = #tpu.pipeline_mode<synchronous>, transform_indices = @transform_2, window_bounds = array<i64: 1, 32>}, {pipeline_mode = #tpu.pipeline_mode<synchronous>, transform_indices = @transform_3, window_bounds = array<i64: 32, 32>}, {pipeline_mode = #tpu.pipeline_mode<synchronous>, transform_indices = @transform_4, window_bounds = array<i64: 1, 32>}, {pipeline_mode = #tpu.pipeline_mode<synchronous>, transform_indices = @transform_5, window_bounds = array<i64: 32, 16>}, {pipeline_mode = #tpu.pipeline_mode<synchronous>, transform_indices = @transform_6, window_bounds = array<i64: 1, 16>}, {pipeline_mode = #tpu.pipeline_mode<synchronous>, transform_indices = @transform_7, window_bounds = array<i64: 16, 4>}, {pipeline_mode = #tpu.pipeline_mode<synchronous>, transform_indices = @transform_8, window_bounds = array<i64: 1, 4>}, {transform_indices = @transform_9, window_bounds = array<i64: 152, 4>}]} {
    %c0 = arith.constant 0 : index
    %c0_0 = arith.constant 0 : index
    %0 = vector.load %arg1[%c0, %c0_0] : memref<152x8xf32, #tpu.memory_space<vmem>>, vector<152x8xf32>
    %c0_1 = arith.constant 0 : index
    %c0_2 = arith.constant 0 : index
    %1 = vector.load %arg2[%c0_1, %c0_2] : memref<8x32xf32, #tpu.memory_space<vmem>>, vector<8x32xf32>
    %cst = arith.constant dense<0.000000e+00> : vector<152x32xf32>
    %2 = tpu.matmul %0, %1, %cst {dimension_numbers = #tpu.dot_dimension_numbers<[1], [0], [0], [1], [0, 0, 1, 1], [], []>} : vector<152x8xf32>, vector<8x32xf32>, vector<152x32xf32> -> vector<152x32xf32>
    %c0_3 = arith.constant 0 : index
    %c0_4 = arith.constant 0 : index
    %3 = vector.load %arg3[%c0_3, %c0_4] : memref<1x32xf32, #tpu.memory_space<vmem>>, vector<1x32xf32>
    %4 = vector.broadcast %3 : vector<1x32xf32> to vector<152x32xf32>
    %5 = arith.addf %2, %4 : vector<152x32xf32>
    %cst_5 = arith.constant 0.000000e+00 : f32
    %6 = vector.broadcast %cst_5 : f32 to vector<152x32xf32>
    %7 = arith.maximumf %5, %6 : vector<152x32xf32>
    %c0_6 = arith.constant 0 : index
    %c0_7 = arith.constant 0 : index
    %8 = vector.load %arg4[%c0_6, %c0_7] : memref<32x32xf32, #tpu.memory_space<vmem>>, vector<32x32xf32>
    %cst_8 = arith.constant dense<0.000000e+00> : vector<152x32xf32>
    %9 = tpu.matmul %7, %8, %cst_8 {dimension_numbers = #tpu.dot_dimension_numbers<[1], [0], [0], [1], [0, 0, 1, 1], [], []>} : vector<152x32xf32>, vector<32x32xf32>, vector<152x32xf32> -> vector<152x32xf32>
    %c0_9 = arith.constant 0 : index
    %c0_10 = arith.constant 0 : index
    %10 = vector.load %arg5[%c0_9, %c0_10] : memref<1x32xf32, #tpu.memory_space<vmem>>, vector<1x32xf32>
    %11 = vector.broadcast %10 : vector<1x32xf32> to vector<152x32xf32>
    %12 = arith.addf %9, %11 : vector<152x32xf32>
    %cst_11 = arith.constant 0.000000e+00 : f32
    %13 = vector.broadcast %cst_11 : f32 to vector<152x32xf32>
    %14 = arith.maximumf %12, %13 : vector<152x32xf32>
    %c0_12 = arith.constant 0 : index
    %c0_13 = arith.constant 0 : index
    %15 = vector.load %arg6[%c0_12, %c0_13] : memref<32x16xf32, #tpu.memory_space<vmem>>, vector<32x16xf32>
    %cst_14 = arith.constant dense<0.000000e+00> : vector<152x16xf32>
    %16 = tpu.matmul %14, %15, %cst_14 {dimension_numbers = #tpu.dot_dimension_numbers<[1], [0], [0], [1], [0, 0, 1, 1], [], []>} : vector<152x32xf32>, vector<32x16xf32>, vector<152x16xf32> -> vector<152x16xf32>
    %c0_15 = arith.constant 0 : index
    %c0_16 = arith.constant 0 : index
    %17 = vector.load %arg7[%c0_15, %c0_16] : memref<1x16xf32, #tpu.memory_space<vmem>>, vector<1x16xf32>
    %18 = vector.broadcast %17 : vector<1x16xf32> to vector<152x16xf32>
    %19 = arith.addf %16, %18 : vector<152x16xf32>
    %cst_17 = arith.constant 0.000000e+00 : f32
    %20 = vector.broadcast %cst_17 : f32 to vector<152x16xf32>
    %21 = arith.maximumf %19, %20 : vector<152x16xf32>
    %c0_18 = arith.constant 0 : index
    %c0_19 = arith.constant 0 : index
    %22 = vector.load %arg8[%c0_18, %c0_19] : memref<16x4xf32, #tpu.memory_space<vmem>>, vector<16x4xf32>
    %cst_20 = arith.constant dense<0.000000e+00> : vector<152x4xf32>
    %23 = tpu.matmul %21, %22, %cst_20 {dimension_numbers = #tpu.dot_dimension_numbers<[1], [0], [0], [1], [0, 0, 1, 1], [], []>} : vector<152x16xf32>, vector<16x4xf32>, vector<152x4xf32> -> vector<152x4xf32>
    %c0_21 = arith.constant 0 : index
    %c0_22 = arith.constant 0 : index
    %24 = vector.load %arg9[%c0_21, %c0_22] : memref<1x4xf32, #tpu.memory_space<vmem>>, vector<1x4xf32>
    %25 = vector.broadcast %24 : vector<1x4xf32> to vector<152x4xf32>
    %26 = arith.addf %23, %25 : vector<152x4xf32>
    %c0_23 = arith.constant 0 : index
    %c0_24 = arith.constant 0 : index
    %27 = vector.load %arg10[%c0_23, %c0_24] : memref<152x4xf32, #tpu.memory_space<vmem>>, vector<152x4xf32>
    tpu.vector_store %arg10[%c0_23, %c0_24], %26 {strides = array<i32>} : memref<152x4xf32, #tpu.memory_space<vmem>>, vector<152x4xf32>,
    return
  }
  func.func @transform_0(%arg0: i32) -> (i32, i32) {
    %c0_i32 = arith.constant 0 : i32
    %c0_i32_0 = arith.constant 0 : i32
    return %arg0, %c0_i32 : i32, i32
  }
  func.func @transform_1(%arg0: i32) -> (i32, i32) {
    %c0_i32 = arith.constant 0 : i32
    %c0_i32_0 = arith.constant 0 : i32
    %c0_i32_1 = arith.constant 0 : i32
    return %c0_i32, %c0_i32_0 : i32, i32
  }
  func.func @transform_2(%arg0: i32) -> (i32, i32) {
    %c0_i32 = arith.constant 0 : i32
    %c0_i32_0 = arith.constant 0 : i32
    %c0_i32_1 = arith.constant 0 : i32
    return %c0_i32, %c0_i32_0 : i32, i32
  }
  func.func @transform_3(%arg0: i32) -> (i32, i32) {
    %c0_i32 = arith.constant 0 : i32
    %c0_i32_0 = arith.constant 0 : i32
    %c0_i32_1 = arith.constant 0 : i32
    return %c0_i32, %c0_i32_0 : i32, i32
  }
  func.func @transform_4(%arg0: i32) -> (i32, i32) {
    %c0_i32 = arith.constant 0 : i32
    %c0_i32_0 = arith.constant 0 : i32
    %c0_i32_1 = arith.constant 0 : i32
    return %c0_i32, %c0_i32_0 : i32, i32
  }
  func.func @transform_5(%arg0: i32) -> (i32, i32) {
    %c0_i32 = arith.constant 0 : i32
    %c0_i32_0 = arith.constant 0 : i32
    %c0_i32_1 = arith.constant 0 : i32
    return %c0_i32, %c0_i32_0 : i32, i32
  }
  func.func @transform_6(%arg0: i32) -> (i32, i32) {
    %c0_i32 = arith.constant 0 : i32
    %c0_i32_0 = arith.constant 0 : i32
    %c0_i32_1 = arith.constant 0 : i32
    return %c0_i32, %c0_i32_0 : i32, i32
  }
  func.func @transform_7(%arg0: i32) -> (i32, i32) {
    %c0_i32 = arith.constant 0 : i32
    %c0_i32_0 = arith.constant 0 : i32
    %c0_i32_1 = arith.constant 0 : i32
    return %c0_i32, %c0_i32_0 : i32, i32
  }
  func.func @transform_8(%arg0: i32) -> (i32, i32) {
    %c0_i32 = arith.constant 0 : i32
    %c0_i32_0 = arith.constant 0 : i32
    %c0_i32_1 = arith.constant 0 : i32
    return %c0_i32, %c0_i32_0 : i32, i32
  }
  func.func @transform_9(%arg0: i32) -> (i32, i32) {
    %c0_i32 = arith.constant 0 : i32
    %c0_i32_0 = arith.constant 0 : i32
    return %arg0, %c0_i32 : i32, i32
  }
}

</mosaic_0001>

<llo_original>
// kernel: tpu_custom_call.1
$region0: #{tpu_custom_call.1}
  #allocation0 [shape = 'u32[]', space=smem, size = 0x4, offset = 0x4, fixed_abs, tag = 'smem constant byte address 0x4 - core index']
  #allocation1 [shape = 'u32[144,128]{1,0:T(1,128)}', space=vmem, size = 0x12000, scoped, tag = 'internal scratch']
  %s0 = inlined_call_operand.vmem [shape: f32[300,8], index: 0, kind: input, shape index: {}]
  %s1 = inlined_call_operand.vmem [shape: f32[8,32], index: 1, kind: input, shape index: {}]
  %s2 = inlined_call_operand.vmem [shape: f32[1,32], index: 2, kind: input, shape index: {}]
  %s3 = inlined_call_operand.vmem [shape: f32[32,32], index: 3, kind: input, shape index: {}]
  %s4 = inlined_call_operand.vmem [shape: f32[1,32], index: 4, kind: input, shape index: {}]
  %s5 = inlined_call_operand.vmem [shape: f32[32,16], index: 5, kind: input, shape index: {}]
  %s6 = inlined_call_operand.vmem [shape: f32[1,16], index: 6, kind: input, shape index: {}]
  %s7 = inlined_call_operand.vmem [shape: f32[16,4], index: 7, kind: input, shape index: {}]
  %s8 = inlined_call_operand.vmem [shape: f32[1,4], index: 8, kind: input, shape index: {}]
  %s9 = inlined_call_operand.vmem [shape: f32[300,4], index: 9, kind: output, shape index: {}]
  %s10 = sld [smem:[#allocation0]]
  $region69: #{tpu_custom_call.1} parent=0
    _
  %s12 = ssub.s32 1, %s10
  %s13 = scalar_select 0, %s12, %s10
  loop: start=0, step=1, limit=4
  $region2: #{tpu_custom_call.1} parent=0 // loop_pre_header
    _
  $region3: #{tpu_custom_call.1} parent=0 // loop_header
    %s15 = sphi 0, %s19
    %p16 = scmp.ge.s32.totalorder %s15, 4
    %s25 = sphi 0, %s27
    %s28 = sphi 0, %s25
    %s29 = sphi 0, %s28
    %s45 = sphi 0, %s29
    %s49 = sphi 0, %s49
    %s51 = sphi 0, %s49
    %s52 = sphi 0, %s51
    %s66 = sphi 0, %s52
    %s70 = sphi 0, %s70
    %s72 = sphi 0, %s70
    %s73 = sphi 0, %s72
    %s87 = sphi 0, %s73
    %s91 = sphi 0, %s91
    %s93 = sphi 0, %s91
    %s94 = sphi 0, %s93
    %s108 = sphi 0, %s94
    %s112 = sphi 0, %s112
    %s114 = sphi 0, %s112
    %s115 = sphi 0, %s114
    %s129 = sphi 0, %s115
    %s133 = sphi 0, %s133
    %s135 = sphi 0, %s133
    %s136 = sphi 0, %s135
    %s150 = sphi 0, %s136
    %s154 = sphi 0, %s154
    %s156 = sphi 0, %s154
    %s157 = sphi 0, %s156
    %s171 = sphi 0, %s157
    %s175 = sphi 0, %s175
    %s177 = sphi 0, %s175
    %s178 = sphi 0, %s177
    %s192 = sphi 0, %s178
    %s196 = sphi 0, %s196
    %s198 = sphi 0, %s196
    %s199 = sphi 0, %s198
    %s213 = sphi 0, %s199
    %s219 = sphi 0, %s221
    %s222 = sphi 0, %s219
    %s223 = sphi 0, %s222
    %s239 = sphi 0, %s223
  $region4: #{tpu_custom_call.1} parent=0 // loop_header_branch
    %18 = sbr.rel (%p16) target = $region8
  $region5: #{tpu_custom_call.1} parent=0 // loop_body
    %s20 = ssub.s32 %s15, 1
    %s21 = ssub.s32 %s15, 2
    %s22 = sadd.s32 %s15, 1
    %s23 = ssub.s32 %s15, %s22
    %p24 = scmp.eq.s32.totalorder %s23, 0
    %s26 = sadd.s32 %s25, 1
    %s27 = scalar_select %p24, %s25, %s26
    %p30 = pneg %p24
    %p31 = scmp.eq.s32.totalorder %s15, 1
    %p32 = por %p30, %p31
    %p33 = scmp.ne.s32.totalorder %s25, %s28
    %p34 = scmp.eq.s32.totalorder %s15, 0
    %p35 = por %p33, %p34
    %p36 = scmp.ne.s32.totalorder %s25, %s28
    %p37 = scmp.eq.s32.totalorder %s20, 1
    %p38 = por %p36, %p37
    %p39 = scmp.ne.s32.totalorder %s28, %s29
    %p40 = scmp.eq.s32.totalorder %s20, 0
    %p41 = por %p39, %p40
    %p42 = scmp.ne.s32.totalorder %s28, %s29
    %p43 = scmp.eq.s32.totalorder %s21, 1
    %p44 = por %p42, %p43
    %p46 = scmp.ne.s32.totalorder %s29, %s45
    %p47 = scmp.eq.s32.totalorder %s21, 0
    %p48 = por %p46, %p47
    %s50 = sadd.s32 %s49, 1
    %p53 = scmp.eq.s32.totalorder %s15, 1
    %p54 = scmp.ne.s32.totalorder %s49, %s51
    %p55 = scmp.eq.s32.totalorder %s15, 0
    %p56 = por %p54, %p55
    %p57 = scmp.ne.s32.totalorder %s49, %s51
    %p58 = scmp.eq.s32.totalorder %s20, 1
    %p59 = por %p57, %p58
    %p60 = scmp.ne.s32.totalorder %s51, %s52
    %p61 = scmp.eq.s32.totalorder %s20, 0
    %p62 = por %p60, %p61
    %p63 = scmp.ne.s32.totalorder %s51, %s52
    %p64 = scmp.eq.s32.totalorder %s21, 1
    %p65 = por %p63, %p64
    %p67 = scmp.ne.s32.totalorder %s52, %s66
    %p68 = scmp.eq.s32.totalorder %s21, 0
    %p69 = por %p67, %p68
    %s71 = sadd.s32 %s70, 1
    %p74 = scmp.eq.s32.totalorder %s15, 1
    %p75 = scmp.ne.s32.totalorder %s70, %s72
    %p76 = scmp.eq.s32.totalorder %s15, 0
    %p77 = por %p75, %p76
    %p78 = scmp.ne.s32.totalorder %s70, %s72
    %p79 = scmp.eq.s32.totalorder %s20, 1
    %p80 = por %p78, %p79
    %p81 = scmp.ne.s32.totalorder %s72, %s73
    %p82 = scmp.eq.s32.totalorder %s20, 0
    %p83 = por %p81, %p82
    %p84 = scmp.ne.s32.totalorder %s72, %s73
    %p85 = scmp.eq.s32.totalorder %s21, 1
    %p86 = por %p84, %p85
    %p88 = scmp.ne.s32.totalorder %s73, %s87
    %p89 = scmp.eq.s32.totalorder %s21, 0
    %p90 = por %p88, %p89
    %s92 = sadd.s32 %s91, 1
    %p95 = scmp.eq.s32.totalorder %s15, 1
    %p96 = scmp.ne.s32.totalorder %s91, %s93
    %p97 = scmp.eq.s32.totalorder %s15, 0
    %p98 = por %p96, %p97
    %p99 = scmp.ne.s32.totalorder %s91, %s93
    %p100 = scmp.eq.s32.totalorder %s20, 1
    %p101 = por %p99, %p100
    %p102 = scmp.ne.s32.totalorder %s93, %s94
    %p103 = scmp.eq.s32.totalorder %s20, 0
    %p104 = por %p102, %p103
    %p105 = scmp.ne.s32.totalorder %s93, %s94
    %p106 = scmp.eq.s32.totalorder %s21, 1
    %p107 = por %p105, %p106
    %p109 = scmp.ne.s32.totalorder %s94, %s108
    %p110 = scmp.eq.s32.totalorder %s21, 0
    %p111 = por %p109, %p110
    %s113 = sadd.s32 %s112, 1
    %p116 = scmp.eq.s32.totalorder %s15, 1
    %p117 = scmp.ne.s32.totalorder %s112, %s114
    %p118 = scmp.eq.s32.totalorder %s15, 0
    %p119 = por %p117, %p118
    %p120 = scmp.ne.s32.totalorder %s112, %s114
    %p121 = scmp.eq.s32.totalorder %s20, 1
    %p122 = por %p120, %p121
    %p123 = scmp.ne.s32.totalorder %s114, %s115
    %p124 = scmp.eq.s32.totalorder %s20, 0
    %p125 = por %p123, %p124
    %p126 = scmp.ne.s32.totalorder %s114, %s115
    %p127 = scmp.eq.s32.totalorder %s21, 1
    %p128 = por %p126, %p127
    %p130 = scmp.ne.s32.totalorder %s115, %s129
    %p131 = scmp.eq.s32.totalorder %s21, 0
    %p132 = por %p130, %p131
    %s134 = sadd.s32 %s133, 1
    %p137 = scmp.eq.s32.totalorder %s15, 1
    %p138 = scmp.ne.s32.totalorder %s133, %s135
    %p139 = scmp.eq.s32.totalorder %s15, 0
    %p140 = por %p138, %p139
    %p141 = scmp.ne.s32.totalorder %s133, %s135
    %p142 = scmp.eq.s32.totalorder %s20, 1
    %p143 = por %p141, %p142
    %p144 = scmp.ne.s32.totalorder %s135, %s136
    %p145 = scmp.eq.s32.totalorder %s20, 0
    %p146 = por %p144, %p145
    %p147 = scmp.ne.s32.totalorder %s135, %s136
    %p148 = scmp.eq.s32.totalorder %s21, 1
    %p149 = por %p147, %p148
    %p151 = scmp.ne.s32.totalorder %s136, %s150
    %p152 = scmp.eq.s32.totalorder %s21, 0
    %p153 = por %p151, %p152
    %s155 = sadd.s32 %s154, 1
    %p158 = scmp.eq.s32.totalorder %s15, 1
    %p159 = scmp.ne.s32.totalorder %s154, %s156
    %p160 = scmp.eq.s32.totalorder %s15, 0
    %p161 = por %p159, %p160
    %p162 = scmp.ne.s32.totalorder %s154, %s156
    %p163 = scmp.eq.s32.totalorder %s20, 1
    %p164 = por %p162, %p163
    %p165 = scmp.ne.s32.totalorder %s156, %s157
    %p166 = scmp.eq.s32.totalorder %s20, 0
    %p167 = por %p165, %p166
    %p168 = scmp.ne.s32.totalorder %s156, %s157
    %p169 = scmp.eq.s32.totalorder %s21, 1
    %p170 = por %p168, %p169
    %p172 = scmp.ne.s32.totalorder %s157, %s171
    %p173 = scmp.eq.s32.totalorder %s21, 0
    %p174 = por %p172, %p173
    %s176 = sadd.s32 %s175, 1
    %p179 = scmp.eq.s32.totalorder %s15, 1
    %p180 = scmp.ne.s32.totalorder %s175, %s177
    %p181 = scmp.eq.s32.totalorder %s15, 0
    %p182 = por %p180, %p181
    %p183 = scmp.ne.s32.totalorder %s175, %s177
    %p184 = scmp.eq.s32.totalorder %s20, 1
    %p185 = por %p183, %p184
    %p186 = scmp.ne.s32.totalorder %s177, %s178
    %p187 = scmp.eq.s32.totalorder %s20, 0
    %p188 = por %p186, %p187
    %p189 = scmp.ne.s32.totalorder %s177, %s178
    %p190 = scmp.eq.s32.totalorder %s21, 1
    %p191 = por %p189, %p190
    %p193 = scmp.ne.s32.totalorder %s178, %s192
    %p194 = scmp.eq.s32.totalorder %s21, 0
    %p195 = por %p193, %p194
    %s197 = sadd.s32 %s196, 1
    %p200 = scmp.eq.s32.totalorder %s15, 1
    %p201 = scmp.ne.s32.totalorder %s196, %s198
    %p202 = scmp.eq.s32.totalorder %s15, 0
    %p203 = por %p201, %p202
    %p204 = scmp.ne.s32.totalorder %s196, %s198
    %p205 = scmp.eq.s32.totalorder %s20, 1
    %p206 = por %p204, %p205
    %p207 = scmp.ne.s32.totalorder %s198, %s199
    %p208 = scmp.eq.s32.totalorder %s20, 0
    %p209 = por %p207, %p208
    %p210 = scmp.ne.s32.totalorder %s198, %s199
    %p211 = scmp.eq.s32.totalorder %s21, 1
    %p212 = por %p210, %p211
    %p214 = scmp.ne.s32.totalorder %s199, %s213
    %p215 = scmp.eq.s32.totalorder %s21, 0
    %p216 = por %p214, %p215
    %s217 = ssub.s32 %s15, %s22
    %p218 = scmp.eq.s32.totalorder %s217, 0
    %s220 = sadd.s32 %s219, 1
    %s221 = scalar_select %p218, %s219, %s220
    %p224 = pneg %p218
    %p225 = scmp.eq.s32.totalorder %s15, 1
    %p226 = por %p224, %p225
    %p227 = scmp.ne.s32.totalorder %s219, %s222
    %p228 = scmp.eq.s32.totalorder %s15, 0
    %p229 = por %p227, %p228
    %p230 = scmp.ne.s32.totalorder %s219, %s222
    %p231 = scmp.eq.s32.totalorder %s20, 1
    %p232 = por %p230, %p231
    %p233 = scmp.ne.s32.totalorder %s222, %s223
    %p234 = scmp.eq.s32.totalorder %s20, 0
    %p235 = por %p233, %p234
    %p236 = scmp.ne.s32.totalorder %s222, %s223
    %p237 = scmp.eq.s32.totalorder %s21, 1
    %p238 = por %p236, %p237
    %p240 = scmp.ne.s32.totalorder %s223, %s239
    %p241 = scmp.eq.s32.totalorder %s21, 0
    %p242 = por %p240, %p241
    %p243 = scmp.le.s32.totalorder 1, %s15
    %p244 = scmp.lt.s32.totalorder %s15, 3
    %p245 = pnand %p243, %p244
    %p246 = pneg %p245
    // Predicated region
    $region9: #{tpu_custom_call.1} parent=5 // pred_check
      _
    $region10: #{tpu_custom_call.1} parent=5 // pred_check_branch
      %248 = sbr.rel (%p245) target = $region12
    $region11: #{tpu_custom_call.1} parent=5 // pred_region
      %s249 = ssub.s32 %s15, 1
      // Predicated region
      $region13: #{tpu_custom_call.1} parent=11 // pred_check
        %p250 = pneg %p62
      $region14: #{tpu_custom_call.1} parent=11 // pred_check_branch
        %252 = sbr.rel (%p250) target = $region16
      $region15: #{tpu_custom_call.1} parent=11 // pred_region
        _
      $region16: #{tpu_custom_call.1} parent=11 // pred_fallthru
        _
      // Predicated region
      $region17: #{tpu_custom_call.1} parent=11 // pred_check
        %p253 = pneg %p83
      $region18: #{tpu_custom_call.1} parent=11 // pred_check_branch
        %255 = sbr.rel (%p253) target = $region20
      $region19: #{tpu_custom_call.1} parent=11 // pred_region
        _
      $region20: #{tpu_custom_call.1} parent=11 // pred_fallthru
        _
      // Predicated region
      $region21: #{tpu_custom_call.1} parent=11 // pred_check
        %p256 = pneg %p104
      $region22: #{tpu_custom_call.1} parent=11 // pred_check_branch
        %258 = sbr.rel (%p256) target = $region24
      $region23: #{tpu_custom_call.1} parent=11 // pred_region
        _
      $region24: #{tpu_custom_call.1} parent=11 // pred_fallthru
        _
      // Predicated region
      $region25: #{tpu_custom_call.1} parent=11 // pred_check
        %p259 = pneg %p125
      $region26: #{tpu_custom_call.1} parent=11 // pred_check_branch
        %261 = sbr.rel (%p259) target = $region28
      $region27: #{tpu_custom_call.1} parent=11 // pred_region
        _
      $region28: #{tpu_custom_call.1} parent=11 // pred_fallthru
        _
      // Predicated region
      $region29: #{tpu_custom_call.1} parent=11 // pred_check
        %p262 = pneg %p146
      $region30: #{tpu_custom_call.1} parent=11 // pred_check_branch
        %264 = sbr.rel (%p262) target = $region32
      $region31: #{tpu_custom_call.1} parent=11 // pred_region
        _
      $region32: #{tpu_custom_call.1} parent=11 // pred_fallthru
        _
      // Predicated region
      $region33: #{tpu_custom_call.1} parent=11 // pred_check
        %p265 = pneg %p167
      $region34: #{tpu_custom_call.1} parent=11 // pred_check_branch
        %267 = sbr.rel (%p265) target = $region36
      $region35: #{tpu_custom_call.1} parent=11 // pred_region
        _
      $region36: #{tpu_custom_call.1} parent=11 // pred_fallthru
        _
      // Predicated region
      $region37: #{tpu_custom_call.1} parent=11 // pred_check
        %p268 = pneg %p188
      $region38: #{tpu_custom_call.1} parent=11 // pred_check_branch
        %270 = sbr.rel (%p268) target = $region40
      $region39: #{tpu_custom_call.1} parent=11 // pred_region
        _
      $region40: #{tpu_custom_call.1} parent=11 // pred_fallthru
        _
      // Predicated region
      $region41: #{tpu_custom_call.1} parent=11 // pred_check
        %p271 = pneg %p209
      $region42: #{tpu_custom_call.1} parent=11 // pred_check_branch
        %273 = sbr.rel (%p271) target = $region44
      $region43: #{tpu_custom_call.1} parent=11 // pred_region
        _
      $region44: #{tpu_custom_call.1} parent=11 // pred_fallthru
        _
    $region12: #{tpu_custom_call.1} parent=5 // pred_fallthru
      _
    %p274 = scmp.lt.s32.totalorder %s15, 2
    // Predicated region
    $region45: #{tpu_custom_call.1} parent=5 // pred_check
      %p275 = pneg %p274
    $region46: #{tpu_custom_call.1} parent=5 // pred_check_branch
      %277 = sbr.rel (%p275) target = $region48
    $region47: #{tpu_custom_call.1} parent=5 // pred_region
      // Predicated region
      $region49: #{tpu_custom_call.1} parent=47 // pred_check
        %p278 = pneg %p35
      $region50: #{tpu_custom_call.1} parent=47 // pred_check_branch
        %280 = sbr.rel (%p278) target = $region52
      $region51: #{tpu_custom_call.1} parent=47 // pred_region
        %s281 = smul.u32 19, %s15
        %p282 = scmp.lt.s32.totalorder %s281, 37
        %s283 = scalar_select %p282, %s281, 37
        %s284 = smul.addr %s283, 8
        %s285 = scalar_lea.vmem %s0, %s284
        %s286 = smul.u32 19, %s15
      $region52: #{tpu_custom_call.1} parent=47 // pred_fallthru
        _
    $region48: #{tpu_custom_call.1} parent=5 // pred_fallthru
      _
    %p287 = scmp.le.s32.totalorder 1, %s15
    %p288 = scmp.lt.s32.totalorder %s15, 3
    %p289 = pnand %p287, %p288
    %p290 = pneg %p289
    // Predicated region
    $region53: #{tpu_custom_call.1} parent=5 // pred_check
      _
    $region54: #{tpu_custom_call.1} parent=5 // pred_check_branch
      %292 = sbr.rel (%p289) target = $region56
    $region55: #{tpu_custom_call.1} parent=5 // pred_region
      %s293 = ssub.s32 %s15, 1
      %s294 = smul.u32 19, %s20
      %p295 = scmp.lt.s32.totalorder %s294, 37
      %s296 = scalar_select %p295, %s294, 37
      %s297 = smul.addr %s296, 8
      %s298 = scalar_lea.vmem %s0, %s297
      %p299 = pneg %p41
      %p300 = pneg %p38
      %p301 = pneg %p62
      %p302 = pneg %p59
      %p303 = pneg %p83
      %p304 = pneg %p80
      %p305 = pneg %p104
      %p306 = pneg %p101
      %p307 = pneg %p125
      %p308 = pneg %p122
      %p309 = pneg %p146
      %p310 = pneg %p143
      %p311 = pneg %p167
      %p312 = pneg %p164
      %p313 = pneg %p188
      %p314 = pneg %p185
      %p315 = pneg %p209
      %p316 = pneg %p206
      %p317 = pneg %p235
      %p318 = pneg %p232
      %s319 = smul.u32 19, %s20
      %p320 = scmp.lt.s32.totalorder %s319, 37
      %s321 = scalar_select %p320, %s319, 37
      %s322 = smul.addr %s321, 8
      %s323 = scalar_lea.vmem %s9, %s322
      %s324 = smul.u32 19, %s20
      %p325 = scmp.lt.s32.totalorder %s324, 37
      %s326 = scalar_select %p325, %s324, 37
      %s327 = smul.addr %s326, 8
      %s328 = scalar_lea.vmem %s0, %s327
      %s329 = smul.u32 19, %s20
      %s330 = smul.u32 19, %s20
      %p331 = scmp.lt.s32.totalorder %s330, 37
      %s332 = scalar_select %p331, %s330, 37
      %s333 = smul.addr %s332, 8
      %s334 = scalar_lea.vmem %s9, %s333
      %s335 = smul.u32 19, %s20
      %v336 = vld [vmem:[%s328] sm:$0xff]
      %v337 = vld [vmem:[%s328 + $0x8] sm:$0xff]
      %v338 = vld [vmem:[%s328 + $0x10] sm:$0xff]
      %v339 = vld [vmem:[%s328 + $0x18] sm:$0xff]
      %v340 = vld [vmem:[%s328 + $0x20] sm:$0xff]
      %v341 = vld [vmem:[%s328 + $0x28] sm:$0xff]
      %v342 = vld [vmem:[%s328 + $0x30] sm:$0xff]
      %v343 = vld [vmem:[%s328 + $0x38] sm:$0xff]
      %v344 = vld [vmem:[%s328 + $0x40] sm:$0xff]
      %v345 = vld [vmem:[%s328 + $0x48] sm:$0xff]
      %v346 = vld [vmem:[%s328 + $0x50] sm:$0xff]
      %v347 = vld [vmem:[%s328 + $0x58] sm:$0xff]
      %v348 = vld [vmem:[%s328 + $0x60] sm:$0xff]
      %v349 = vld [vmem:[%s328 + $0x68] sm:$0xff]
      %v350 = vld [vmem:[%s328 + $0x70] sm:$0xff]
      %v351 = vld [vmem:[%s328 + $0x78] sm:$0xff]
      %v352 = vld [vmem:[%s328 + $0x80] sm:$0xff]
      %v353 = vld [vmem:[%s328 + $0x88] sm:$0xff]
      %v354 = vld [vmem:[%s328 + $0x90] sm:$0xff]
      %v355 = vld [vmem:[%s1] sm:$0xff]
      %v356 = vld [vmem:[%s2] sm:$0x1]
      %v358 = vlaneseq
      %v359 = vshrl.u32 %v358, 7
      %v360 = vsub.s32 0, %v359
      %v361 = vrot.slane %v356, %v360
      %vm363 = vcmask 64512
      %v365 = vsel %vm363, %v336, 0
      %v368 = vsel %vm363, %v337, 0
      %v371 = vsel %vm363, %v338, 0
      %v374 = vsel %vm363, %v339, 0
      %v377 = vsel %vm363, %v340, 0
      %v380 = vsel %vm363, %v341, 0
      %v383 = vsel %vm363, %v342, 0
      %v386 = vsel %vm363, %v343, 0
      %v389 = vsel %vm363, %v344, 0
      %v392 = vsel %vm363, %v345, 0
      %v395 = vsel %vm363, %v346, 0
      %v398 = vsel %vm363, %v347, 0
      %v401 = vsel %vm363, %v348, 0
      %v404 = vsel %vm363, %v349, 0
      %v407 = vsel %vm363, %v350, 0
      %v410 = vsel %vm363, %v351, 0
      %v413 = vsel %vm363, %v352, 0
      %v416 = vsel %vm363, %v353, 0
      %v419 = vsel %vm363, %v354, 0
      %421 = vmatprep.subr.mxu0 0.0
      %422 = vmatpush1.msra.mxu0 %v355
      %423 = vmatprep.subr.mxu0 0.0
      %424 = vmatpush1.msra.mxu0 0.0
      %425 = vmatprep.subr.mxu0 0.0
      %426 = vmatpush1.msra.mxu0 0.0
      %427 = vmatprep.subr.mxu0 0.0
      %428 = vmatpush1.msra.mxu0 0.0
      %429 = vmatprep.subr.mxu0 0.0
      %430 = vmatpush1.msra.mxu0 0.0
      %431 = vmatprep.subr.mxu0 0.0
      %432 = vmatpush1.msra.mxu0 0.0
      %433 = vmatprep.subr.mxu0 0.0
      %434 = vmatpush1.msra.mxu0 0.0
      %435 = vmatprep.subr.mxu0 0.0
      %436 = vmatpush1.msra.mxu0 0.0
      %437 = vmatprep.subr.mxu0 0.0
      %438 = vmatpush1.msra.mxu0 0.0
      %439 = vmatprep.subr.mxu0 0.0
      %440 = vmatpush1.msra.mxu0 0.0
      %441 = vmatprep.subr.mxu0 0.0
      %442 = vmatpush1.msra.mxu0 0.0
      %443 = vmatprep.subr.mxu0 0.0
      %444 = vmatpush1.msra.mxu0 0.0
      %445 = vmatprep.subr.mxu0 0.0
      %446 = vmatpush1.msra.mxu0 0.0
      %447 = vmatprep.subr.mxu0 0.0
      %448 = vmatpush1.msra.mxu0 0.0
      %449 = vmatprep.subr.mxu0 0.0
      %450 = vmatpush1.msra.mxu0 0.0
      %451 = vmatprep.subr.mxu0 0.0
      %452 = vmatpush1.msra.mxu0 0.0
      %453 = vmatprep.subr.mxu0 0.0
      %454 = vmatpush1.msra.mxu0 0.0
      %455 = vmatprep.subr.mxu0 0.0
      %456 = vmatpush1.msra.mxu0 0.0
      %457 = vmatprep.subr.mxu0 0.0
      %458 = vmatpush1.msra.mxu0 0.0
      %459 = vmatprep.subr.mxu0 0.0
      %460 = vmatpush1.msra.mxu0 0.0
      %461 = vmatprep.subr.mxu0 0.0
      %462 = vmatpush1.msra.mxu0 0.0
      %463 = vmatprep.subr.mxu0 0.0
      %464 = vmatpush1.msra.mxu0 0.0
      %465 = vmatprep.subr.mxu0 0.0
      %466 = vmatpush1.msra.mxu0 0.0
      %467 = vmatprep.subr.mxu0 0.0
      %468 = vmatpush1.msra.mxu0 0.0
      %469 = vmatprep.subr.mxu0 0.0
      %470 = vmatpush1.msra.mxu0 0.0
      %471 = vmatprep.subr.mxu0 0.0
      %472 = vmatpush1.msra.mxu0 0.0
      %473 = vmatprep.subr.mxu0 0.0
      %474 = vmatpush1.msra.mxu0 0.0
      %475 = vmatprep.subr.mxu0 0.0
      %476 = vmatpush1.msra.mxu0 0.0
      %477 = vmatprep.subr.mxu0 0.0
      %478 = vmatpush1.msra.mxu0 0.0
      %479 = vmatprep.subr.mxu0 0.0
      %480 = vmatpush1.msra.mxu0 0.0
      %481 = vmatprep.subr.mxu0 0.0
      %482 = vmatpush1.msra.mxu0 0.0
      %483 = vmatprep.subr.mxu0 0.0
      %484 = vmatpush1.msra.mxu0 0.0
      %485 = vmatprep.mubr.f32.mxu0 0.0
      %486 = vmatmul.mubr.f32.gmra.mrb[0].mxu0 %v365
      %v487 = vpop.f32.mrb[0].mxu0
      %v488 = vadd.f32 %v361, %v487
      %v489 = vpop.f32.mrb[0].mxu0
      %490 = vmatprep.mubr.f32.mxu0 0.0
      %491 = vmatmul.mubr.f32.gmra.mrb[0].mxu0 %v368
      %v492 = vpop.f32.mrb[0].mxu0
      %v493 = vadd.f32 %v361, %v492
      %v494 = vpop.f32.mrb[0].mxu0
      %495 = vmatprep.mubr.f32.mxu0 0.0
      %496 = vmatmul.mubr.f32.gmra.mrb[0].mxu0 %v371
      %v497 = vpop.f32.mrb[0].mxu0
      %v498 = vadd.f32 %v361, %v497
      %v499 = vpop.f32.mrb[0].mxu0
      %500 = vmatprep.mubr.f32.mxu0 0.0
      %501 = vmatmul.mubr.f32.gmra.mrb[0].mxu0 %v374
      %v502 = vpop.f32.mrb[0].mxu0
      %v503 = vadd.f32 %v361, %v502
      %v504 = vpop.f32.mrb[0].mxu0
      %505 = vmatprep.mubr.f32.mxu0 0.0
      %506 = vmatmul.mubr.f32.gmra.mrb[0].mxu0 %v377
      %v507 = vpop.f32.mrb[0].mxu0
      %v508 = vadd.f32 %v361, %v507
      %v509 = vpop.f32.mrb[0].mxu0
      %510 = vmatprep.mubr.f32.mxu0 0.0
      %511 = vmatmul.mubr.f32.gmra.mrb[0].mxu0 %v380
      %v512 = vpop.f32.mrb[0].mxu0
      %v513 = vadd.f32 %v361, %v512
      %v514 = vpop.f32.mrb[0].mxu0
      %515 = vmatprep.mubr.f32.mxu0 0.0
      %516 = vmatmul.mubr.f32.gmra.mrb[0].mxu0 %v383
      %v517 = vpop.f32.mrb[0].mxu0
      %v518 = vadd.f32 %v361, %v517
      %v519 = vpop.f32.mrb[0].mxu0
      %520 = vmatprep.mubr.f32.mxu0 0.0
      %521 = vmatmul.mubr.f32.gmra.mrb[0].mxu0 %v386
      %v522 = vpop.f32.mrb[0].mxu0
      %v523 = vadd.f32 %v361, %v522
      %v524 = vpop.f32.mrb[0].mxu0
      %525 = vmatprep.mubr.f32.mxu0 0.0
      %526 = vmatmul.mubr.f32.gmra.mrb[0].mxu0 %v389
      %v527 = vpop.f32.mrb[0].mxu0
      %v528 = vadd.f32 %v361, %v527
      %v529 = vpop.f32.mrb[0].mxu0
      %530 = vmatprep.mubr.f32.mxu0 0.0
      %531 = vmatmul.mubr.f32.gmra.mrb[0].mxu0 %v392
      %v532 = vpop.f32.mrb[0].mxu0
      %v533 = vadd.f32 %v361, %v532
      %v534 = vpop.f32.mrb[0].mxu0
      %535 = vmatprep.mubr.f32.mxu0 0.0
      %536 = vmatmul.mubr.f32.gmra.mrb[0].mxu0 %v395
      %v537 = vpop.f32.mrb[0].mxu0
      %v538 = vadd.f32 %v361, %v537
      %v539 = vpop.f32.mrb[0].mxu0
      %540 = vmatprep.mubr.f32.mxu0 0.0
      %541 = vmatmul.mubr.f32.gmra.mrb[0].mxu0 %v398
      %v542 = vpop.f32.mrb[0].mxu0
      %v543 = vadd.f32 %v361, %v542
      %v544 = vpop.f32.mrb[0].mxu0
      %545 = vmatprep.mubr.f32.mxu0 0.0
      %546 = vmatmul.mubr.f32.gmra.mrb[0].mxu0 %v401
      %v547 = vpop.f32.mrb[0].mxu0
      %v548 = vadd.f32 %v361, %v547
      %v549 = vpop.f32.mrb[0].mxu0
      %550 = vmatprep.mubr.f32.mxu0 0.0
      %551 = vmatmul.mubr.f32.gmra.mrb[0].mxu0 %v404
      %v552 = vpop.f32.mrb[0].mxu0
      %v553 = vadd.f32 %v361, %v552
      %v554 = vpop.f32.mrb[0].mxu0
      %555 = vmatprep.mubr.f32.mxu0 0.0
      %556 = vmatmul.mubr.f32.gmra.mrb[0].mxu0 %v407
      %v557 = vpop.f32.mrb[0].mxu0
      %v558 = vadd.f32 %v361, %v557
      %v559 = vpop.f32.mrb[0].mxu0
      %560 = vmatprep.mubr.f32.mxu0 0.0
      %561 = vmatmul.mubr.f32.gmra.mrb[0].mxu0 %v410
      %v562 = vpop.f32.mrb[0].mxu0
      %v563 = vadd.f32 %v361, %v562
      %v564 = vpop.f32.mrb[0].mxu0
      %565 = vmatprep.mubr.f32.mxu0 0.0
      %566 = vmatmul.mubr.f32.gmra.mrb[0].mxu0 %v413
      %v567 = vpop.f32.mrb[0].mxu0
      %v568 = vadd.f32 %v361, %v567
      %v569 = vpop.f32.mrb[0].mxu0
      %570 = vmatprep.mubr.f32.mxu0 0.0
      %571 = vmatmul.mubr.f32.gmra.mrb[0].mxu0 %v416
      %v572 = vpop.f32.mrb[0].mxu0
      %v573 = vadd.f32 %v361, %v572
      %v574 = vpop.f32.mrb[0].mxu0
      %575 = vmatprep.mubr.f32.mxu0 0.0
      %576 = vmatmul.mubr.f32.gmra.mrb[0].mxu0 %v419
      %v577 = vpop.f32.mrb[0].mxu0
      %v578 = vadd.f32 %v361, %v577
      %v579 = vpop.f32.mrb[0].mxu0
      %580 = vdwg.mxu0
      %v581 = vmax.f32 %v488, 0.0
      %v582 = vmax.f32 %v493, 0.0
      %v583 = vmax.f32 %v498, 0.0
      %v584 = vmax.f32 %v503, 0.0
      %v585 = vmax.f32 %v508, 0.0
      %v586 = vmax.f32 %v513, 0.0
      %v587 = vmax.f32 %v518, 0.0
      %v588 = vmax.f32 %v523, 0.0
      %v589 = vmax.f32 %v528, 0.0
      %v590 = vmax.f32 %v533, 0.0
      %v591 = vmax.f32 %v538, 0.0
      %v592 = vmax.f32 %v543, 0.0
      %v593 = vmax.f32 %v548, 0.0
      %v594 = vmax.f32 %v553, 0.0
      %v595 = vmax.f32 %v558, 0.0
      %v596 = vmax.f32 %v563, 0.0
      %v597 = vmax.f32 %v568, 0.0
      %v598 = vmax.f32 %v573, 0.0
      %v599 = vmax.f32 %v578, 0.0
      %v600 = vld [vmem:[%s3] sm:$0xff]
      %v601 = vld [vmem:[%s3 + $0x8] sm:$0xff]
      %v602 = vld [vmem:[%s3 + $0x10] sm:$0xff]
      %v603 = vld [vmem:[%s3 + $0x18] sm:$0xff]
      %v604 = vld [vmem:[%s4] sm:$0x1]
      %v606 = vlaneseq
      %v607 = vshrl.u32 %v606, 7
      %v608 = vsub.s32 0, %v607
      %v609 = vrot.slane %v604, %v608
      %vm611 = vcmask 261120
      %v613 = vsel %vm611, %v581, 0
      %v616 = vsel %vm611, %v582, 0
      %v619 = vsel %vm611, %v583, 0
      %v622 = vsel %vm611, %v584, 0
      %v625 = vsel %vm611, %v585, 0
      %v628 = vsel %vm611, %v586, 0
      %v631 = vsel %vm611, %v587, 0
      %v634 = vsel %vm611, %v588, 0
      %v637 = vsel %vm611, %v589, 0
      %v640 = vsel %vm611, %v590, 0
      %v643 = vsel %vm611, %v591, 0
      %v646 = vsel %vm611, %v592, 0
      %v649 = vsel %vm611, %v593, 0
      %v652 = vsel %vm611, %v594, 0
      %v655 = vsel %vm611, %v595, 0
      %v658 = vsel %vm611, %v596, 0
      %v661 = vsel %vm611, %v597, 0
      %v664 = vsel %vm611, %v598, 0
      %v667 = vsel %vm611, %v599, 0
      %669 = vmatprep.subr.mxu0 0.0
      %670 = vmatpush1.msra.mxu0 %v600
      %671 = vmatprep.subr.mxu0 0.0
      %672 = vmatpush1.msra.mxu0 %v601
      %673 = vmatprep.subr.mxu0 0.0
      %674 = vmatpush1.msra.mxu0 %v602
      %675 = vmatprep.subr.mxu0 0.0
      %676 = vmatpush1.msra.mxu0 %v603
      %677 = vmatprep.subr.mxu0 0.0
      %678 = vmatpush1.msra.mxu0 0.0
      %679 = vmatprep.subr.mxu0 0.0
      %680 = vmatpush1.msra.mxu0 0.0
      %681 = vmatprep.subr.mxu0 0.0
      %682 = vmatpush1.msra.mxu0 0.0
      %683 = vmatprep.subr.mxu0 0.0
      %684 = vmatpush1.msra.mxu0 0.0
      %685 = vmatprep.subr.mxu0 0.0
      %686 = vmatpush1.msra.mxu0 0.0
      %687 = vmatprep.subr.mxu0 0.0
      %688 = vmatpush1.msra.mxu0 0.0
      %689 = vmatprep.subr.mxu0 0.0
      %690 = vmatpush1.msra.mxu0 0.0
      %691 = vmatprep.subr.mxu0 0.0
      %692 = vmatpush1.msra.mxu0 0.0
      %693 = vmatprep.subr.mxu0 0.0
      %694 = vmatpush1.msra.mxu0 0.0
      %695 = vmatprep.subr.mxu0 0.0
      %696 = vmatpush1.msra.mxu0 0.0
      %697 = vmatprep.subr.mxu0 0.0
      %698 = vmatpush1.msra.mxu0 0.0
      %699 = vmatprep.subr.mxu0 0.0
      %700 = vmatpush1.msra.mxu0 0.0
      %701 = vmatprep.subr.mxu0 0.0
      %702 = vmatpush1.msra.mxu0 0.0
      %703 = vmatprep.subr.mxu0 0.0
      %704 = vmatpush1.msra.mxu0 0.0
      %705 = vmatprep.subr.mxu0 0.0
      %706 = vmatpush1.msra.mxu0 0.0
      %707 = vmatprep.subr.mxu0 0.0
      %708 = vmatpush1.msra.mxu0 0.0
      %709 = vmatprep.subr.mxu0 0.0
      %710 = vmatpush1.msra.mxu0 0.0
      %711 = vmatprep.subr.mxu0 0.0
      %712 = vmatpush1.msra.mxu0 0.0
      %713 = vmatprep.subr.mxu0 0.0
      %714 = vmatpush1.msra.mxu0 0.0
      %715 = vmatprep.subr.mxu0 0.0
      %716 = vmatpush1.msra.mxu0 0.0
      %717 = vmatprep.subr.mxu0 0.0
      %718 = vmatpush1.msra.mxu0 0.0
      %719 = vmatprep.subr.mxu0 0.0
      %720 = vmatpush1.msra.mxu0 0.0
      %721 = vmatprep.subr.mxu0 0.0
      %722 = vmatpush1.msra.mxu0 0.0
      %723 = vmatprep.subr.mxu0 0.0
      %724 = vmatpush1.msra.mxu0 0.0
      %725 = vmatprep.subr.mxu0 0.0
      %726 = vmatpush1.msra.mxu0 0.0
      %727 = vmatprep.subr.mxu0 0.0
      %728 = vmatpush1.msra.mxu0 0.0
      %729 = vmatprep.subr.mxu0 0.0
      %730 = vmatpush1.msra.mxu0 0.0
      %731 = vmatprep.subr.mxu0 0.0
      %732 = vmatpush1.msra.mxu0 0.0
      %733 = vmatprep.mubr.f32.mxu0 0.0
      %734 = vmatmul.mubr.f32.gmra.mrb[0].mxu0 %v613
      %v735 = vpop.f32.mrb[0].mxu0
      %v736 = vadd.f32 %v609, %v735
      %v737 = vpop.f32.mrb[0].mxu0
      %738 = vmatprep.mubr.f32.mxu0 0.0
      %739 = vmatmul.mubr.f32.gmra.mrb[0].mxu0 %v616
      %v740 = vpop.f32.mrb[0].mxu0
      %v741 = vadd.f32 %v609, %v740
      %v742 = vpop.f32.mrb[0].mxu0
      %743 = vmatprep.mubr.f32.mxu0 0.0
      %744 = vmatmul.mubr.f32.gmra.mrb[0].mxu0 %v619
      %v745 = vpop.f32.mrb[0].mxu0
      %v746 = vadd.f32 %v609, %v745
      %v747 = vpop.f32.mrb[0].mxu0
      %748 = vmatprep.mubr.f32.mxu0 0.0
      %749 = vmatmul.mubr.f32.gmra.mrb[0].mxu0 %v622
      %v750 = vpop.f32.mrb[0].mxu0
      %v751 = vadd.f32 %v609, %v750
      %v752 = vpop.f32.mrb[0].mxu0
      %753 = vmatprep.mubr.f32.mxu0 0.0
      %754 = vmatmul.mubr.f32.gmra.mrb[0].mxu0 %v625
      %v755 = vpop.f32.mrb[0].mxu0
      %v756 = vadd.f32 %v609, %v755
      %v757 = vpop.f32.mrb[0].mxu0
      %758 = vmatprep.mubr.f32.mxu0 0.0
      %759 = vmatmul.mubr.f32.gmra.mrb[0].mxu0 %v628
      %v760 = vpop.f32.mrb[0].mxu0
      %v761 = vadd.f32 %v609, %v760
      %v762 = vpop.f32.mrb[0].mxu0
      %763 = vmatprep.mubr.f32.mxu0 0.0
      %764 = vmatmul.mubr.f32.gmra.mrb[0].mxu0 %v631
      %v765 = vpop.f32.mrb[0].mxu0
      %v766 = vadd.f32 %v609, %v765
      %v767 = vpop.f32.mrb[0].mxu0
      %768 = vmatprep.mubr.f32.mxu0 0.0
      %769 = vmatmul.mubr.f32.gmra.mrb[0].mxu0 %v634
      %v770 = vpop.f32.mrb[0].mxu0
      %v771 = vadd.f32 %v609, %v770
      %v772 = vpop.f32.mrb[0].mxu0
      %773 = vmatprep.mubr.f32.mxu0 0.0
      %774 = vmatmul.mubr.f32.gmra.mrb[0].mxu0 %v637
      %v775 = vpop.f32.mrb[0].mxu0
      %v776 = vadd.f32 %v609, %v775
      %v777 = vpop.f32.mrb[0].mxu0
      %778 = vmatprep.mubr.f32.mxu0 0.0
      %779 = vmatmul.mubr.f32.gmra.mrb[0].mxu0 %v640
      %v780 = vpop.f32.mrb[0].mxu0
      %v781 = vadd.f32 %v609, %v780
      %v782 = vpop.f32.mrb[0].mxu0
      %783 = vmatprep.mubr.f32.mxu0 0.0
      %784 = vmatmul.mubr.f32.gmra.mrb[0].mxu0 %v643
      %v785 = vpop.f32.mrb[0].mxu0
      %v786 = vadd.f32 %v609, %v785
      %v787 = vpop.f32.mrb[0].mxu0
      %788 = vmatprep.mubr.f32.mxu0 0.0
      %789 = vmatmul.mubr.f32.gmra.mrb[0].mxu0 %v646
      %v790 = vpop.f32.mrb[0].mxu0
      %v791 = vadd.f32 %v609, %v790
      %v792 = vpop.f32.mrb[0].mxu0
      %793 = vmatprep.mubr.f32.mxu0 0.0
      %794 = vmatmul.mubr.f32.gmra.mrb[0].mxu0 %v649
      %v795 = vpop.f32.mrb[0].mxu0
      %v796 = vadd.f32 %v609, %v795
      %v797 = vpop.f32.mrb[0].mxu0
      %798 = vmatprep.mubr.f32.mxu0 0.0
      %799 = vmatmul.mubr.f32.gmra.mrb[0].mxu0 %v652
      %v800 = vpop.f32.mrb[0].mxu0
      %v801 = vadd.f32 %v609, %v800
      %v802 = vpop.f32.mrb[0].mxu0
      %803 = vmatprep.mubr.f32.mxu0 0.0
      %804 = vmatmul.mubr.f32.gmra.mrb[0].mxu0 %v655
      %v805 = vpop.f32.mrb[0].mxu0
      %v806 = vadd.f32 %v609, %v805
      %v807 = vpop.f32.mrb[0].mxu0
      %808 = vmatprep.mubr.f32.mxu0 0.0
      %809 = vmatmul.mubr.f32.gmra.mrb[0].mxu0 %v658
      %v810 = vpop.f32.mrb[0].mxu0
      %v811 = vadd.f32 %v609, %v810
      %v812 = vpop.f32.mrb[0].mxu0
      %813 = vmatprep.mubr.f32.mxu0 0.0
      %814 = vmatmul.mubr.f32.gmra.mrb[0].mxu0 %v661
      %v815 = vpop.f32.mrb[0].mxu0
      %v816 = vadd.f32 %v609, %v815
      %v817 = vpop.f32.mrb[0].mxu0
      %818 = vmatprep.mubr.f32.mxu0 0.0
      %819 = vmatmul.mubr.f32.gmra.mrb[0].mxu0 %v664
      %v820 = vpop.f32.mrb[0].mxu0
      %v821 = vadd.f32 %v609, %v820
      %v822 = vpop.f32.mrb[0].mxu0
      %823 = vmatprep.mubr.f32.mxu0 0.0
      %824 = vmatmul.mubr.f32.gmra.mrb[0].mxu0 %v667
      %v825 = vpop.f32.mrb[0].mxu0
      %v826 = vadd.f32 %v609, %v825
      %v827 = vpop.f32.mrb[0].mxu0
      %828 = vdwg.mxu0
      %v829 = vmax.f32 %v736, 0.0
      %v830 = vmax.f32 %v741, 0.0
      %v831 = vmax.f32 %v746, 0.0
      %v832 = vmax.f32 %v751, 0.0
      %v833 = vmax.f32 %v756, 0.0
      %v834 = vmax.f32 %v761, 0.0
      %v835 = vmax.f32 %v766, 0.0
      %v836 = vmax.f32 %v771, 0.0
      %v837 = vmax.f32 %v776, 0.0
      %v838 = vmax.f32 %v781, 0.0
      %v839 = vmax.f32 %v786, 0.0
      %v840 = vmax.f32 %v791, 0.0
      %v841 = vmax.f32 %v796, 0.0
      %v842 = vmax.f32 %v801, 0.0
      %v843 = vmax.f32 %v806, 0.0
      %v844 = vmax.f32 %v811, 0.0
      %v845 = vmax.f32 %v816, 0.0
      %v846 = vmax.f32 %v821, 0.0
      %v847 = vmax.f32 %v826, 0.0
      %v848 = vld [vmem:[%s5] sm:$0xff]
      %v849 = vld [vmem:[%s5 + $0x8] sm:$0xff]
      %v850 = vld [vmem:[%s5 + $0x10] sm:$0xff]
      %v851 = vld [vmem:[%s5 + $0x18] sm:$0xff]
      %v852 = vld [vmem:[%s6] sm:$0x1]
      %v854 = vlaneseq
      %v855 = vshrl.u32 %v854, 7
      %v856 = vsub.s32 0, %v855
      %v857 = vrot.slane %v852, %v856
      %v860 = vsel %vm611, %v829, 0
      %v863 = vsel %vm611, %v830, 0
      %v866 = vsel %vm611, %v831, 0
      %v869 = vsel %vm611, %v832, 0
      %v872 = vsel %vm611, %v833, 0
      %v875 = vsel %vm611, %v834, 0
      %v878 = vsel %vm611, %v835, 0
      %v881 = vsel %vm611, %v836, 0
      %v884 = vsel %vm611, %v837, 0
      %v887 = vsel %vm611, %v838, 0
      %v890 = vsel %vm611, %v839, 0
      %v893 = vsel %vm611, %v840, 0
      %v896 = vsel %vm611, %v841, 0
      %v899 = vsel %vm611, %v842, 0
      %v902 = vsel %vm611, %v843, 0
      %v905 = vsel %vm611, %v844, 0
      %v908 = vsel %vm611, %v845, 0
      %v911 = vsel %vm611, %v846, 0
      %v914 = vsel %vm611, %v847, 0
      %916 = vmatprep.subr.mxu0 0.0
      %917 = vmatpush1.msra.mxu0 %v848
      %918 = vmatprep.subr.mxu0 0.0
      %919 = vmatpush1.msra.mxu0 %v849
      %920 = vmatprep.subr.mxu0 0.0
      %921 = vmatpush1.msra.mxu0 %v850
      %922 = vmatprep.subr.mxu0 0.0
      %923 = vmatpush1.msra.mxu0 %v851
      %924 = vmatprep.subr.mxu0 0.0
      %925 = vmatpush1.msra.mxu0 0.0
      %926 = vmatprep.subr.mxu0 0.0
      %927 = vmatpush1.msra.mxu0 0.0
      %928 = vmatprep.subr.mxu0 0.0
      %929 = vmatpush1.msra.mxu0 0.0
      %930 = vmatprep.subr.mxu0 0.0
      %931 = vmatpush1.msra.mxu0 0.0
      %932 = vmatprep.subr.mxu0 0.0
      %933 = vmatpush1.msra.mxu0 0.0
      %934 = vmatprep.subr.mxu0 0.0
      %935 = vmatpush1.msra.mxu0 0.0
      %936 = vmatprep.subr.mxu0 0.0
      %937 = vmatpush1.msra.mxu0 0.0
      %938 = vmatprep.subr.mxu0 0.0
      %939 = vmatpush1.msra.mxu0 0.0
      %940 = vmatprep.subr.mxu0 0.0
      %941 = vmatpush1.msra.mxu0 0.0
      %942 = vmatprep.subr.mxu0 0.0
      %943 = vmatpush1.msra.mxu0 0.0
      %944 = vmatprep.subr.mxu0 0.0
      %945 = vmatpush1.msra.mxu0 0.0
      %946 = vmatprep.subr.mxu0 0.0
      %947 = vmatpush1.msra.mxu0 0.0
      %948 = vmatprep.subr.mxu0 0.0
      %949 = vmatpush1.msra.mxu0 0.0
      %950 = vmatprep.subr.mxu0 0.0
      %951 = vmatpush1.msra.mxu0 0.0
      %952 = vmatprep.subr.mxu0 0.0
      %953 = vmatpush1.msra.mxu0 0.0
      %954 = vmatprep.subr.mxu0 0.0
      %955 = vmatpush1.msra.mxu0 0.0
      %956 = vmatprep.subr.mxu0 0.0
      %957 = vmatpush1.msra.mxu0 0.0
      %958 = vmatprep.subr.mxu0 0.0
      %959 = vmatpush1.msra.mxu0 0.0
      %960 = vmatprep.subr.mxu0 0.0
      %961 = vmatpush1.msra.mxu0 0.0
      %962 = vmatprep.subr.mxu0 0.0
      %963 = vmatpush1.msra.mxu0 0.0
      %964 = vmatprep.subr.mxu0 0.0
      %965 = vmatpush1.msra.mxu0 0.0
      %966 = vmatprep.subr.mxu0 0.0
      %967 = vmatpush1.msra.mxu0 0.0
      %968 = vmatprep.subr.mxu0 0.0
      %969 = vmatpush1.msra.mxu0 0.0
      %970 = vmatprep.subr.mxu0 0.0
      %971 = vmatpush1.msra.mxu0 0.0
      %972 = vmatprep.subr.mxu0 0.0
      %973 = vmatpush1.msra.mxu0 0.0
      %974 = vmatprep.subr.mxu0 0.0
      %975 = vmatpush1.msra.mxu0 0.0
      %976 = vmatprep.subr.mxu0 0.0
      %977 = vmatpush1.msra.mxu0 0.0
      %978 = vmatprep.subr.mxu0 0.0
      %979 = vmatpush1.msra.mxu0 0.0
      %980 = vmatprep.mubr.f32.mxu0 0.0
      %981 = vmatmul.mubr.f32.gmra.mrb[0].mxu0 %v860
      %v982 = vpop.f32.mrb[0].mxu0
      %v983 = vadd.f32 %v857, %v982
      %v984 = vpop.f32.mrb[0].mxu0
      %985 = vmatprep.mubr.f32.mxu0 0.0
      %986 = vmatmul.mubr.f32.gmra.mrb[0].mxu0 %v863
      %v987 = vpop.f32.mrb[0].mxu0
      %v988 = vadd.f32 %v857, %v987
      %v989 = vpop.f32.mrb[0].mxu0
      %990 = vmatprep.mubr.f32.mxu0 0.0
      %991 = vmatmul.mubr.f32.gmra.mrb[0].mxu0 %v866
      %v992 = vpop.f32.mrb[0].mxu0
      %v993 = vadd.f32 %v857, %v992
      %v994 = vpop.f32.mrb[0].mxu0
      %995 = vmatprep.mubr.f32.mxu0 0.0
      %996 = vmatmul.mubr.f32.gmra.mrb[0].mxu0 %v869
      %v997 = vpop.f32.mrb[0].mxu0
      %v998 = vadd.f32 %v857, %v997
      %v999 = vpop.f32.mrb[0].mxu0
      %1000 = vmatprep.mubr.f32.mxu0 0.0
      %1001 = vmatmul.mubr.f32.gmra.mrb[0].mxu0 %v872
      %v1002 = vpop.f32.mrb[0].mxu0
      %v1003 = vadd.f32 %v857, %v1002
      %v1004 = vpop.f32.mrb[0].mxu0
      %1005 = vmatprep.mubr.f32.mxu0 0.0
      %1006 = vmatmul.mubr.f32.gmra.mrb[0].mxu0 %v875
      %v1007 = vpop.f32.mrb[0].mxu0
      %v1008 = vadd.f32 %v857, %v1007
      %v1009 = vpop.f32.mrb[0].mxu0
      %1010 = vmatprep.mubr.f32.mxu0 0.0
      %1011 = vmatmul.mubr.f32.gmra.mrb[0].mxu0 %v878
      %v1012 = vpop.f32.mrb[0].mxu0
      %v1013 = vadd.f32 %v857, %v1012
      %v1014 = vpop.f32.mrb[0].mxu0
      %1015 = vmatprep.mubr.f32.mxu0 0.0
      %1016 = vmatmul.mubr.f32.gmra.mrb[0].mxu0 %v881
      %v1017 = vpop.f32.mrb[0].mxu0
      %v1018 = vadd.f32 %v857, %v1017
      %v1019 = vpop.f32.mrb[0].mxu0
      %1020 = vmatprep.mubr.f32.mxu0 0.0
      %1021 = vmatmul.mubr.f32.gmra.mrb[0].mxu0 %v884
      %v1022 = vpop.f32.mrb[0].mxu0
      %v1023 = vadd.f32 %v857, %v1022
      %v1024 = vpop.f32.mrb[0].mxu0
      %1025 = vmatprep.mubr.f32.mxu0 0.0
      %1026 = vmatmul.mubr.f32.gmra.mrb[0].mxu0 %v887
      %v1027 = vpop.f32.mrb[0].mxu0
      %v1028 = vadd.f32 %v857, %v1027
      %v1029 = vpop.f32.mrb[0].mxu0
      %1030 = vmatprep.mubr.f32.mxu0 0.0
      %1031 = vmatmul.mubr.f32.gmra.mrb[0].mxu0 %v890
      %v1032 = vpop.f32.mrb[0].mxu0
      %v1033 = vadd.f32 %v857, %v1032
      %v1034 = vpop.f32.mrb[0].mxu0
      %1035 = vmatprep.mubr.f32.mxu0 0.0
      %1036 = vmatmul.mubr.f32.gmra.mrb[0].mxu0 %v893
      %v1037 = vpop.f32.mrb[0].mxu0
      %v1038 = vadd.f32 %v857, %v1037
      %v1039 = vpop.f32.mrb[0].mxu0
      %1040 = vmatprep.mubr.f32.mxu0 0.0
      %1041 = vmatmul.mubr.f32.gmra.mrb[0].mxu0 %v896
      %v1042 = vpop.f32.mrb[0].mxu0
      %v1043 = vadd.f32 %v857, %v1042
      %v1044 = vpop.f32.mrb[0].mxu0
      %1045 = vmatprep.mubr.f32.mxu0 0.0
      %1046 = vmatmul.mubr.f32.gmra.mrb[0].mxu0 %v899
      %v1047 = vpop.f32.mrb[0].mxu0
      %v1048 = vadd.f32 %v857, %v1047
      %v1049 = vpop.f32.mrb[0].mxu0
      %1050 = vmatprep.mubr.f32.mxu0 0.0
      %1051 = vmatmul.mubr.f32.gmra.mrb[0].mxu0 %v902
      %v1052 = vpop.f32.mrb[0].mxu0
      %v1053 = vadd.f32 %v857, %v1052
      %v1054 = vpop.f32.mrb[0].mxu0
      %1055 = vmatprep.mubr.f32.mxu0 0.0
      %1056 = vmatmul.mubr.f32.gmra.mrb[0].mxu0 %v905
      %v1057 = vpop.f32.mrb[0].mxu0
      %v1058 = vadd.f32 %v857, %v1057
      %v1059 = vpop.f32.mrb[0].mxu0
      %1060 = vmatprep.mubr.f32.mxu0 0.0
      %1061 = vmatmul.mubr.f32.gmra.mrb[0].mxu0 %v908
      %v1062 = vpop.f32.mrb[0].mxu0
      %v1063 = vadd.f32 %v857, %v1062
      %v1064 = vpop.f32.mrb[0].mxu0
      %1065 = vmatprep.mubr.f32.mxu0 0.0
      %1066 = vmatmul.mubr.f32.gmra.mrb[0].mxu0 %v911
      %v1067 = vpop.f32.mrb[0].mxu0
      %v1068 = vadd.f32 %v857, %v1067
      %v1069 = vpop.f32.mrb[0].mxu0
      %1070 = vmatprep.mubr.f32.mxu0 0.0
      %1071 = vmatmul.mubr.f32.gmra.mrb[0].mxu0 %v914
      %v1072 = vpop.f32.mrb[0].mxu0
      %v1073 = vadd.f32 %v857, %v1072
      %v1074 = vpop.f32.mrb[0].mxu0
      %1075 = vdwg.mxu0
      %v1076 = vmax.f32 %v983, 0.0
      %v1077 = vmax.f32 %v988, 0.0
      %v1078 = vmax.f32 %v993, 0.0
      %v1079 = vmax.f32 %v998, 0.0
      %v1080 = vmax.f32 %v1003, 0.0
      %v1081 = vmax.f32 %v1008, 0.0
      %v1082 = vmax.f32 %v1013, 0.0
      %v1083 = vmax.f32 %v1018, 0.0
      %v1084 = vmax.f32 %v1023, 0.0
      %v1085 = vmax.f32 %v1028, 0.0
      %v1086 = vmax.f32 %v1033, 0.0
      %v1087 = vmax.f32 %v1038, 0.0
      %v1088 = vmax.f32 %v1043, 0.0
      %v1089 = vmax.f32 %v1048, 0.0
      %v1090 = vmax.f32 %v1053, 0.0
      %v1091 = vmax.f32 %v1058, 0.0
      %v1092 = vmax.f32 %v1063, 0.0
      %v1093 = vmax.f32 %v1068, 0.0
      %v1094 = vmax.f32 %v1073, 0.0
      %v1095 = vld [vmem:[%s7] sm:$0xff]
      %v1096 = vld [vmem:[%s7 + $0x8] sm:$0xff]
      %v1097 = vld [vmem:[%s8] sm:$0x1]
      %v1099 = vlaneseq
      %v1100 = vshrl.u32 %v1099, 7
      %v1101 = vsub.s32 0, %v1100
      %v1102 = vrot.slane %v1097, %v1101
      %vm1104 = vcmask 130048
      %v1106 = vsel %vm1104, %v1076, 0
      %v1109 = vsel %vm1104, %v1077, 0
      %v1112 = vsel %vm1104, %v1078, 0
      %v1115 = vsel %vm1104, %v1079, 0
      %v1118 = vsel %vm1104, %v1080, 0
      %v1121 = vsel %vm1104, %v1081, 0
      %v1124 = vsel %vm1104, %v1082, 0
      %v1127 = vsel %vm1104, %v1083, 0
      %v1130 = vsel %vm1104, %v1084, 0
      %v1133 = vsel %vm1104, %v1085, 0
      %v1136 = vsel %vm1104, %v1086, 0
      %v1139 = vsel %vm1104, %v1087, 0
      %v1142 = vsel %vm1104, %v1088, 0
      %v1145 = vsel %vm1104, %v1089, 0
      %v1148 = vsel %vm1104, %v1090, 0
      %v1151 = vsel %vm1104, %v1091, 0
      %v1154 = vsel %vm1104, %v1092, 0
      %v1157 = vsel %vm1104, %v1093, 0
      %v1160 = vsel %vm1104, %v1094, 0
      %1162 = vmatprep.subr.mxu0 0.0
      %1163 = vmatpush1.msra.mxu0 %v1095
      %1164 = vmatprep.subr.mxu0 0.0
      %1165 = vmatpush1.msra.mxu0 %v1096
      %1166 = vmatprep.subr.mxu0 0.0
      %1167 = vmatpush1.msra.mxu0 0.0
      %1168 = vmatprep.subr.mxu0 0.0
      %1169 = vmatpush1.msra.mxu0 0.0
      %1170 = vmatprep.subr.mxu0 0.0
      %1171 = vmatpush1.msra.mxu0 0.0
      %1172 = vmatprep.subr.mxu0 0.0
      %1173 = vmatpush1.msra.mxu0 0.0
      %1174 = vmatprep.subr.mxu0 0.0
      %1175 = vmatpush1.msra.mxu0 0.0
      %1176 = vmatprep.subr.mxu0 0.0
      %1177 = vmatpush1.msra.mxu0 0.0
      %1178 = vmatprep.subr.mxu0 0.0
      %1179 = vmatpush1.msra.mxu0 0.0
      %1180 = vmatprep.subr.mxu0 0.0
      %1181 = vmatpush1.msra.mxu0 0.0
      %1182 = vmatprep.subr.mxu0 0.0
      %1183 = vmatpush1.msra.mxu0 0.0
      %1184 = vmatprep.subr.mxu0 0.0
      %1185 = vmatpush1.msra.mxu0 0.0
      %1186 = vmatprep.subr.mxu0 0.0
      %1187 = vmatpush1.msra.mxu0 0.0
      %1188 = vmatprep.subr.mxu0 0.0
      %1189 = vmatpush1.msra.mxu0 0.0
      %1190 = vmatprep.subr.mxu0 0.0
      %1191 = vmatpush1.msra.mxu0 0.0
      %1192 = vmatprep.subr.mxu0 0.0
      %1193 = vmatpush1.msra.mxu0 0.0
      %1194 = vmatprep.subr.mxu0 0.0
      %1195 = vmatpush1.msra.mxu0 0.0
      %1196 = vmatprep.subr.mxu0 0.0
      %1197 = vmatpush1.msra.mxu0 0.0
      %1198 = vmatprep.subr.mxu0 0.0
      %1199 = vmatpush1.msra.mxu0 0.0
      %1200 = vmatprep.subr.mxu0 0.0
      %1201 = vmatpush1.msra.mxu0 0.0
      %1202 = vmatprep.subr.mxu0 0.0
      %1203 = vmatpush1.msra.mxu0 0.0
      %1204 = vmatprep.subr.mxu0 0.0
      %1205 = vmatpush1.msra.mxu0 0.0
      %1206 = vmatprep.subr.mxu0 0.0
      %1207 = vmatpush1.msra.mxu0 0.0
      %1208 = vmatprep.subr.mxu0 0.0
      %1209 = vmatpush1.msra.mxu0 0.0
      %1210 = vmatprep.subr.mxu0 0.0
      %1211 = vmatpush1.msra.mxu0 0.0
      %1212 = vmatprep.subr.mxu0 0.0
      %1213 = vmatpush1.msra.mxu0 0.0
      %1214 = vmatprep.subr.mxu0 0.0
      %1215 = vmatpush1.msra.mxu0 0.0
      %1216 = vmatprep.subr.mxu0 0.0
      %1217 = vmatpush1.msra.mxu0 0.0
      %1218 = vmatprep.subr.mxu0 0.0
      %1219 = vmatpush1.msra.mxu0 0.0
      %1220 = vmatprep.subr.mxu0 0.0
      %1221 = vmatpush1.msra.mxu0 0.0
      %1222 = vmatprep.subr.mxu0 0.0
      %1223 = vmatpush1.msra.mxu0 0.0
      %1224 = vmatprep.subr.mxu0 0.0
      %1225 = vmatpush1.msra.mxu0 0.0
      %1226 = vmatprep.mubr.f32.mxu0 0.0
      %1227 = vmatmul.mubr.f32.gmra.mrb[0].mxu0 %v1106
      %v1228 = vpop.f32.mrb[0].mxu0
      %v1229 = vadd.f32 %v1102, %v1228
      %v1230 = vpop.f32.mrb[0].mxu0
      %1231 = vmatprep.mubr.f32.mxu0 0.0
      %1232 = vmatmul.mubr.f32.gmra.mrb[0].mxu0 %v1109
      %v1233 = vpop.f32.mrb[0].mxu0
      %v1234 = vadd.f32 %v1102, %v1233
      %v1235 = vpop.f32.mrb[0].mxu0
      %1236 = vmatprep.mubr.f32.mxu0 0.0
      %1237 = vmatmul.mubr.f32.gmra.mrb[0].mxu0 %v1112
      %v1238 = vpop.f32.mrb[0].mxu0
      %v1239 = vadd.f32 %v1102, %v1238
      %v1240 = vpop.f32.mrb[0].mxu0
      %1241 = vmatprep.mubr.f32.mxu0 0.0
      %1242 = vmatmul.mubr.f32.gmra.mrb[0].mxu0 %v1115
      %v1243 = vpop.f32.mrb[0].mxu0
      %v1244 = vadd.f32 %v1102, %v1243
      %v1245 = vpop.f32.mrb[0].mxu0
      %1246 = vmatprep.mubr.f32.mxu0 0.0
      %1247 = vmatmul.mubr.f32.gmra.mrb[0].mxu0 %v1118
      %v1248 = vpop.f32.mrb[0].mxu0
      %v1249 = vadd.f32 %v1102, %v1248
      %v1250 = vpop.f32.mrb[0].mxu0
      %1251 = vmatprep.mubr.f32.mxu0 0.0
      %1252 = vmatmul.mubr.f32.gmra.mrb[0].mxu0 %v1121
      %v1253 = vpop.f32.mrb[0].mxu0
      %v1254 = vadd.f32 %v1102, %v1253
      %v1255 = vpop.f32.mrb[0].mxu0
      %1256 = vmatprep.mubr.f32.mxu0 0.0
      %1257 = vmatmul.mubr.f32.gmra.mrb[0].mxu0 %v1124
      %v1258 = vpop.f32.mrb[0].mxu0
      %v1259 = vadd.f32 %v1102, %v1258
      %v1260 = vpop.f32.mrb[0].mxu0
      %1261 = vmatprep.mubr.f32.mxu0 0.0
      %1262 = vmatmul.mubr.f32.gmra.mrb[0].mxu0 %v1127
      %v1263 = vpop.f32.mrb[0].mxu0
      %v1264 = vadd.f32 %v1102, %v1263
      %v1265 = vpop.f32.mrb[0].mxu0
      %1266 = vmatprep.mubr.f32.mxu0 0.0
      %1267 = vmatmul.mubr.f32.gmra.mrb[0].mxu0 %v1130
      %v1268 = vpop.f32.mrb[0].mxu0
      %v1269 = vadd.f32 %v1102, %v1268
      %v1270 = vpop.f32.mrb[0].mxu0
      %1271 = vmatprep.mubr.f32.mxu0 0.0
      %1272 = vmatmul.mubr.f32.gmra.mrb[0].mxu0 %v1133
      %v1273 = vpop.f32.mrb[0].mxu0
      %v1274 = vadd.f32 %v1102, %v1273
      %v1275 = vpop.f32.mrb[0].mxu0
      %1276 = vmatprep.mubr.f32.mxu0 0.0
      %1277 = vmatmul.mubr.f32.gmra.mrb[0].mxu0 %v1136
      %v1278 = vpop.f32.mrb[0].mxu0
      %v1279 = vadd.f32 %v1102, %v1278
      %v1280 = vpop.f32.mrb[0].mxu0
      %1281 = vmatprep.mubr.f32.mxu0 0.0
      %1282 = vmatmul.mubr.f32.gmra.mrb[0].mxu0 %v1139
      %v1283 = vpop.f32.mrb[0].mxu0
      %v1284 = vadd.f32 %v1102, %v1283
      %v1285 = vpop.f32.mrb[0].mxu0
      %1286 = vmatprep.mubr.f32.mxu0 0.0
      %1287 = vmatmul.mubr.f32.gmra.mrb[0].mxu0 %v1142
      %v1288 = vpop.f32.mrb[0].mxu0
      %v1289 = vadd.f32 %v1102, %v1288
      %v1290 = vpop.f32.mrb[0].mxu0
      %1291 = vmatprep.mubr.f32.mxu0 0.0
      %1292 = vmatmul.mubr.f32.gmra.mrb[0].mxu0 %v1145
      %v1293 = vpop.f32.mrb[0].mxu0
      %v1294 = vadd.f32 %v1102, %v1293
      %v1295 = vpop.f32.mrb[0].mxu0
      %1296 = vmatprep.mubr.f32.mxu0 0.0
      %1297 = vmatmul.mubr.f32.gmra.mrb[0].mxu0 %v1148
      %v1298 = vpop.f32.mrb[0].mxu0
      %v1299 = vadd.f32 %v1102, %v1298
      %v1300 = vpop.f32.mrb[0].mxu0
      %1301 = vmatprep.mubr.f32.mxu0 0.0
      %1302 = vmatmul.mubr.f32.gmra.mrb[0].mxu0 %v1151
      %v1303 = vpop.f32.mrb[0].mxu0
      %v1304 = vadd.f32 %v1102, %v1303
      %v1305 = vpop.f32.mrb[0].mxu0
      %1306 = vmatprep.mubr.f32.mxu0 0.0
      %1307 = vmatmul.mubr.f32.gmra.mrb[0].mxu0 %v1154
      %v1308 = vpop.f32.mrb[0].mxu0
      %v1309 = vadd.f32 %v1102, %v1308
      %v1310 = vpop.f32.mrb[0].mxu0
      %1311 = vmatprep.mubr.f32.mxu0 0.0
      %1312 = vmatmul.mubr.f32.gmra.mrb[0].mxu0 %v1157
      %v1313 = vpop.f32.mrb[0].mxu0
      %v1314 = vadd.f32 %v1102, %v1313
      %v1315 = vpop.f32.mrb[0].mxu0
      %1316 = vmatprep.mubr.f32.mxu0 0.0
      %1317 = vmatmul.mubr.f32.gmra.mrb[0].mxu0 %v1160
      %v1318 = vpop.f32.mrb[0].mxu0
      %v1319 = vadd.f32 %v1102, %v1318
      %v1320 = vpop.f32.mrb[0].mxu0
      %1321 = vdwg.mxu0
      %vm1322 = vcmask 31744
      %1323 = vst.msk [vmem:[%s334] sm:$0xff] %vm1322, %v1229
      %1324 = vst.msk [vmem:[%s334 + $0x8] sm:$0xff] %vm1322, %v1234
      %1325 = vst.msk [vmem:[%s334 + $0x10] sm:$0xff] %vm1322, %v1239
      %1326 = vst.msk [vmem:[%s334 + $0x18] sm:$0xff] %vm1322, %v1244
      %1327 = vst.msk [vmem:[%s334 + $0x20] sm:$0xff] %vm1322, %v1249
      %1328 = vst.msk [vmem:[%s334 + $0x28] sm:$0xff] %vm1322, %v1254
      %1329 = vst.msk [vmem:[%s334 + $0x30] sm:$0xff] %vm1322, %v1259
      %1330 = vst.msk [vmem:[%s334 + $0x38] sm:$0xff] %vm1322, %v1264
      %1331 = vst.msk [vmem:[%s334 + $0x40] sm:$0xff] %vm1322, %v1269
      %1332 = vst.msk [vmem:[%s334 + $0x48] sm:$0xff] %vm1322, %v1274
      %1333 = vst.msk [vmem:[%s334 + $0x50] sm:$0xff] %vm1322, %v1279
      %1334 = vst.msk [vmem:[%s334 + $0x58] sm:$0xff] %vm1322, %v1284
      %1335 = vst.msk [vmem:[%s334 + $0x60] sm:$0xff] %vm1322, %v1289
      %1336 = vst.msk [vmem:[%s334 + $0x68] sm:$0xff] %vm1322, %v1294
      %1337 = vst.msk [vmem:[%s334 + $0x70] sm:$0xff] %vm1322, %v1299
      %1338 = vst.msk [vmem:[%s334 + $0x78] sm:$0xff] %vm1322, %v1304
      %1339 = vst.msk [vmem:[%s334 + $0x80] sm:$0xff] %vm1322, %v1309
      %1340 = vst.msk [vmem:[%s334 + $0x88] sm:$0xff] %vm1322, %v1314
      %1341 = vst.msk [vmem:[%s334 + $0x90] sm:$0xff] %vm1322, %v1319
      %s1342 = smul.u32 19, %s20
      %p1343 = scmp.lt.s32.totalorder %s1342, 37
      %s1344 = scalar_select %p1343, %s1342, 37
      %s1345 = smul.addr %s1344, 8
      %s1346 = scalar_lea.vmem %s9, %s1345
      // Predicated region
      $region57: #{tpu_custom_call.1} parent=55 // pred_check
        %p1347 = pneg %p232
      $region58: #{tpu_custom_call.1} parent=55 // pred_check_branch
        %1349 = sbr.rel (%p1347) target = $region60
      $region59: #{tpu_custom_call.1} parent=55 // pred_region
        %s1350 = smul.u32 19, %s20
      $region60: #{tpu_custom_call.1} parent=55 // pred_fallthru
        _
    $region56: #{tpu_custom_call.1} parent=5 // pred_fallthru
      _
    %p1351 = scmp.le.s32.totalorder 2, %s15
    // Predicated region
    $region61: #{tpu_custom_call.1} parent=5 // pred_check
      %p1352 = pneg %p1351
    $region62: #{tpu_custom_call.1} parent=5 // pred_check_branch
      %1354 = sbr.rel (%p1352) target = $region64
    $region63: #{tpu_custom_call.1} parent=5 // pred_region
      %s1355 = ssub.s32 %s15, 2
      // Predicated region
      $region65: #{tpu_custom_call.1} parent=63 // pred_check
        %p1356 = pneg %p238
      $region66: #{tpu_custom_call.1} parent=63 // pred_check_branch
        %1358 = sbr.rel (%p1356) target = $region68
      $region67: #{tpu_custom_call.1} parent=63 // pred_region
        %s1359 = smul.u32 19, %s21
        %p1360 = scmp.lt.s32.totalorder %s1359, 37
        %s1361 = scalar_select %p1360, %s1359, 37
        %s1362 = smul.addr %s1361, 8
        %s1363 = scalar_lea.vmem %s9, %s1362
      $region68: #{tpu_custom_call.1} parent=63 // pred_fallthru
        _
    $region64: #{tpu_custom_call.1} parent=5 // pred_fallthru
      _
  $region6: #{tpu_custom_call.1} parent=0 // loop_footer
    %s19 = sadd.s32 1, %s15
  $region7: #{tpu_custom_call.1} parent=0 // loop_footer_branch
    %14 = sbr.rel target = $region3
  $region8: #{tpu_custom_call.1} parent=0 // loop_exit
    _

</llo_original>
